<compile_context>
chip_gen: v6e
topology: v6e:2x2x1
jax: 0.10.0
libtpu: 0.0.40
codegen_flags: <defaults>
</compile_context>

<pallas_src>
import jax
import jax.numpy as jnp
from jax.experimental import pallas as pl
from jax.experimental.pallas import tpu as pltpu


def _sine_kernel(params_ref, x_ref, o_ref):
    # params_ref (SMEM): [scale, period, phase] as f32 scalars.
    scale = params_ref[0]
    period = params_ref[1]
    phase = params_ref[2]
    x = x_ref[...].astype(jnp.float32)   # no-op for f32; keeps bf16 inputs accurate
    o_ref[...] = (scale * jnp.sin(period * x + phase)).astype(o_ref.dtype)


def _round_up(x, m):
    return ((x + m - 1) // m) * m


def _choose_layout(n, itemsize):
    """Pick (lane width, row tile, padded rows) for a flattened elementwise slab."""
    # Lane width: as wide as possible (multiple of 128) without over-padding
    # tiny inputs (need at least 8 sublanes of real data at that width).
    lane = 128
    for cand in (4096, 2048, 1024, 512, 256, 128):
        if n >= cand * 8:
            lane = cand
            break
    rows = -(-n // lane)  # cdiv
    # Row tile: ~2 MiB blocks (budgeted at f32 width), multiple of 8.
    target_bytes = 2 << 20
    bytes_per_elem = max(int(itemsize), 4)
    max_tile_r = max(8, (target_bytes // (bytes_per_elem * lane)) // 8 * 8)
    tile_r = min(max_tile_r, _round_up(rows, 8))
    rows_p = _round_up(rows, tile_r)
    return lane, tile_r, rows_p


def sine_activation(x, scale, period, phase):
    """scale * sin(period * x + phase), elementwise, via a Pallas TPU kernel.

    Works for any input shape/float dtype; returns same shape/dtype.
    """
    orig_shape = x.shape
    orig_dtype = x.dtype
    n = x.size
    itemsize = jnp.dtype(orig_dtype).itemsize

    lane, tile_r, rows_p = _choose_layout(n, itemsize)
    n_pad = rows_p * lane

    xf = x.reshape(-1)
    if n_pad != n:
        xf = jnp.pad(xf, (0, n_pad - n))
    x2d = xf.reshape(rows_p, lane)

    params = jnp.stack([
        jnp.asarray(scale, dtype=jnp.float32),
        jnp.asarray(period, dtype=jnp.float32),
        jnp.asarray(phase, dtype=jnp.float32),
    ])

    grid = (rows_p // tile_r,)

    out2d = pl.pallas_call(
        _sine_kernel,
        out_shape=jax.ShapeDtypeStruct((rows_p, lane), orig_dtype),
        grid_spec=pl.GridSpec(
            grid=grid,
            in_specs=[
                # Scalar params live in SMEM, visible at every grid step.
                pl.BlockSpec(memory_space=pltpu.MemorySpace.SMEM),
                pl.BlockSpec((tile_r, lane), lambda i: (i, 0)),
            ],
            out_specs=pl.BlockSpec((tile_r, lane), lambda i: (i, 0)),
        ),
        compiler_params=pltpu.CompilerParams(
            dimension_semantics=("parallel",),
        ),
        # Same shape/dtype elementwise op: allow output to reuse the input slab.
        input_output_aliases={1: 0},
        cost_estimate=pl.CostEstimate(
            flops=3 * n_pad,
            transcendentals=n_pad,
            bytes_accessed=2 * n_pad * itemsize,
        ),
    )(params, x2d)

    return out2d.reshape(-1)[:n].reshape(orig_shape)


if __name__ == "__main__":
    # Parameter init matching SineActivation.__init__ defaults.
    scale_init = 0.001
    period_init = 1.0
    phase_init = 0.0

    key = jax.random.PRNGKey(0)
    x = jax.random.normal(key, (2, 4, 16, 16), dtype=jnp.float32)  # NCHW

    fn = jax.jit(sine_activation)
    out = fn(x, scale_init, period_init, phase_init)
    out = jax.block_until_ready(out)

    # Plain-JAX reference.
    ref = scale_init * jnp.sin(period_init * x + phase_init)
    assert out.shape == x.shape and out.dtype == x.dtype
    assert jnp.allclose(out, ref, atol=1e-6, rtol=1e-6), "mismatch vs reference"

    print("KERNEL_OK")
</pallas_src>

<mosaic_0001>
module attributes {stable_mosaic.version = 11 : i64} {
  func.func @_sine_kernel(%arg0: i32, %arg1: memref<3xf32, #tpu.memory_space<smem>>, %arg2: memref<8x256xf32, #tpu.memory_space<vmem>>, %arg3: memref<8x256xf32, #tpu.memory_space<vmem>>) attributes {dimension_semantics = [#tpu.dimension_semantics<parallel>], iteration_bounds = array<i64: 1>, scalar_prefetch = 0 : i64, scratch_operands = 0 : i64, tpu.core_type = #tpu.core_type<tc>, window_params = [{transform_indices = @transform_0, window_bounds = array<i64: 3>}, {transform_indices = @transform_1, window_bounds = array<i64: 8, 256>}, {transform_indices = @transform_2, window_bounds = array<i64: 8, 256>}]} {
    %c0 = arith.constant 0 : index
    %0 = memref.load %arg1[%c0] : memref<3xf32, #tpu.memory_space<smem>>
    %c1 = arith.constant 1 : index
    %1 = memref.load %arg1[%c1] : memref<3xf32, #tpu.memory_space<smem>>
    %c2 = arith.constant 2 : index
    %2 = memref.load %arg1[%c2] : memref<3xf32, #tpu.memory_space<smem>>
    %c0_0 = arith.constant 0 : index
    %c0_1 = arith.constant 0 : index
    %3 = vector.load %arg2[%c0_0, %c0_1] : memref<8x256xf32, #tpu.memory_space<vmem>>, vector<8x256xf32>
    %4 = vector.broadcast %1 : f32 to vector<8x256xf32>
    %5 = arith.mulf %4, %3 : vector<8x256xf32>
    %6 = vector.broadcast %2 : f32 to vector<8x256xf32>
    %7 = arith.addf %5, %6 : vector<8x256xf32>
    %8 = math.sin %7 : vector<8x256xf32>
    %9 = vector.broadcast %0 : f32 to vector<8x256xf32>
    %10 = arith.mulf %9, %8 : vector<8x256xf32>
    %c0_2 = arith.constant 0 : index
    %c0_3 = arith.constant 0 : index
    %11 = vector.load %arg3[%c0_2, %c0_3] : memref<8x256xf32, #tpu.memory_space<vmem>>, vector<8x256xf32>
    tpu.vector_store %arg3[%c0_2, %c0_3], %10 {strides = array<i32>} : memref<8x256xf32, #tpu.memory_space<vmem>>, vector<8x256xf32>,
    return
  }
  func.func @transform_0(%arg0: i32) -> i32 {
    %c0_i32 = arith.constant 0 : i32
    %c0_i32_0 = arith.constant 0 : i32
    return %c0_i32 : i32
  }
  func.func @transform_1(%arg0: i32) -> (i32, i32) {
    %c0_i32 = arith.constant 0 : i32
    %c0_i32_0 = arith.constant 0 : i32
    return %arg0, %c0_i32 : i32, i32
  }
  func.func @transform_2(%arg0: i32) -> (i32, i32) {
    %c0_i32 = arith.constant 0 : i32
    %c0_i32_0 = arith.constant 0 : i32
    return %arg0, %c0_i32 : i32, i32
  }
}

</mosaic_0001>

<llo_original>
// kernel: sine_activation.1
$region0: #{sine_activation.1}
  #allocation0 [shape = 'u32[]', space=smem, size = 0x4, offset = 0x4, fixed_abs, tag = 'smem constant byte address 0x4 - core index']
  #allocation1 [shape = 'u32[144,128]{1,0:T(1,128)}', space=vmem, size = 0x12000, scoped, tag = 'internal scratch']
  %s0 = inlined_call_operand.vmem [shape: f32[3], index: 0, kind: input, shape index: {}]
  %s1 = inlined_call_operand.vmem [shape: f32[8,256], index: 1, kind: input, shape index: {}, may-alias: {1,2}]
  %s2 = inlined_call_operand.vmem [shape: f32[8,256], index: 2, kind: output, shape index: {}, may-alias: {1,2}]
  %s3 = sld [smem:[#allocation0]]
  $region22: #{sine_activation.1} parent=0
    _
  %s5 = ssub.s32 1, %s3
  %s6 = scalar_select 0, %s5, %s3
  $region1: #{sine_activation.1} parent=0
    #allocation2 [shape = 'u8[512]{0}', space=smem, size = 0x200, scoped, tag = 'input window, operand 0, single buffered']
    #allocation3 [shape = 's32[1]{0}', space=sflag, size = 0x4, scoped, tag = 'scoped memory for sine_activation.1']
    %7 = vsyncpa [#allocation3], 0
    // Predicated region
    $region2: #{sine_activation.1} parent=1 // pred_check
      _
    $region3: #{sine_activation.1} parent=1 // pred_check_branch
      %9 = sbr.rel (0) target = $region5
    $region4: #{sine_activation.1} parent=1 // pred_region
      %s11 = ssub.s32 16, 16
      %12 = vsyncadd [#allocation3], %s11
      %s14 = sshll.u32 %s0, 4
      %s15 = int_to_ptr.vmem [resolvable:$true] %s14
      %17 = dma.vmem_to_smem %s15, 16, [#allocation2], [#allocation3]
    $region5: #{sine_activation.1} parent=1 // pred_fallthru
      _
    // Predicated region
    $region6: #{sine_activation.1} parent=1 // pred_check
      _
    $region7: #{sine_activation.1} parent=1 // pred_check_branch
      %19 = sbr.rel (0) target = $region9
    $region8: #{sine_activation.1} parent=1 // pred_region
      _
    $region9: #{sine_activation.1} parent=1 // pred_fallthru
      _
    // Predicated region
    $region10: #{sine_activation.1} parent=1 // pred_check
      _
    $region11: #{sine_activation.1} parent=1 // pred_check_branch
      %21 = sbr.rel (0) target = $region13
    $region12: #{sine_activation.1} parent=1 // pred_region
      %22 = dma.done [#allocation3], 16
    $region13: #{sine_activation.1} parent=1 // pred_fallthru
      _
    %23 = sfence
    %s24 = sld [smem:[#allocation2]]
    %s25 = sld [smem:[#allocation2 + $0x1]]
    %s26 = sld [smem:[#allocation2 + $0x2]]
    %v27 = vld [vmem:[%s1] sm:$0xff]
    %v28 = vld [vmem:[%s1 + $0x8] sm:$0xff]
    %v29 = vstv %s25
    %v30 = vmul.f32 %v29, %v27
    %v31 = vmul.f32 %v29, %v28
    %v32 = vstv %s26
    %v33 = vadd.f32 %v30, %v32
    %v34 = vadd.f32 %v31, %v32
    %v35 = vand.u32 2147483647, %v33
    %vm36 = vcmp.le.f32.partialorder %v35, 0.7853982
    %vm37 = vcmp.lt.s32.totalorder %v33, 0
    %v38 = vand.u32 %v33, 2139095040
    %v39 = vshrl.u32 %v38, 23
    %v40 = vsub.s32 %v39, 127
    %v41 = vand.u32 2147483647, %v33
    %v42 = vand.u32 %v41, 8388607
    %v43 = vor.u32 %v42, 8388608
    %v44 = vsub.s32 0, %v43
    %v45 = vadd.s32 %v40, 1
    %vm46 = vcmp.gt.s32.totalorder %v45, 0
    %v47 = vsel %vm46, %v45, 0
    %v48 = vshrl.u32 %v47, 5
    %v49 = vand.u32 %v47, 31
    %v50 = vsub.s32 32, %v49
    %v51 = vshrl.u32 683565275, %v50
    %v52 = vshll.u32 683565275, %v49
    %v53 = vshrl.u32 2475754826, %v50
    %v54 = vor.u32 %v52, %v53
    %v55 = vshll.u32 2475754826, %v49
    %v56 = vshrl.u32 2131351028, %v50
    %v57 = vor.u32 %v55, %v56
    %v58 = vshll.u32 2131351028, %v49
    %v59 = vshrl.u32 2102212464, %v50
    %v60 = vor.u32 %v58, %v59
    %v61 = vshll.u32 2102212464, %v49
    %v62 = vshrl.u32 920167782, %v50
    %v63 = vor.u32 %v61, %v62
    %v64 = vshll.u32 920167782, %v49
    %v65 = vshrl.u32 1326507024, %v50
    %v66 = vor.u32 %v64, %v65
    %vm67 = vcmp.lt.s32.totalorder %v48, 1
    %vm68 = vcmp.lt.s32.totalorder %v48, 2
    %vm69 = vcmp.lt.s32.totalorder %v48, 3
    %vm70 = vcmp.lt.s32.totalorder %v48, 4
    %v71 = vsel %vm67, %v51, %v54
    %v72 = vsel %vm70, %v60, 2102212464
    %v73 = vsel %vm69, %v57, %v72
    %v74 = vsel %vm68, %v71, %v73
    %v75 = vsel %vm67, %v54, %v57
    %v76 = vsel %vm70, %v63, 920167782
    %v77 = vsel %vm69, %v60, %v76
    %v78 = vsel %vm68, %v75, %v77
    %v79 = vsel %vm67, %v57, %v60
    %v80 = vsel %vm70, %v66, 1326507024
    %v81 = vsel %vm69, %v63, %v80
    %v82 = vsel %vm68, %v79, %v81
    %v83 = vshll.u32 %v43, 8
    %v84 = vmul.u32.u64.compose %v83, %v82
    %v85 = vextract.low.u32 %v84
    %v86 = vextract.high.u32 %v84
    %v87 = vmul.u32.u64.compose %v83, %v78
    %v88 = vextract.low.u32 %v87
    %v89 = vextract.high.u32 %v87
    %v90 = vmul.u32 %v83, %v74
    %v91 = vadd.s32 %v86, %v88
    %vm92 = vc.u32 %v86, %v88
    %v93 = vadd.s32 %v89, 1
    %v94 = vsel %vm92, %v93, %v89
    %v95 = vadd.s32 %v90, %v94
    %v96 = vadd.s32 %v95, 536870912
    %v97 = vshrl.u32 %v96, 30
    %v98 = vshll.u32 %v97, 30
    %v99 = vsub.s32 %v95, %v98
    %vm100 = vcmp.lt.s32.totalorder %v99, 0
    %v101 = vsub.s32 0, %v99
    %v102 = vsel %vm100, %v101, %v99
    %v103 = vclz %v102
    %v104 = vsub.s32 %v103, 2
    %vm105 = vcmp.gt.s32.totalorder 0, %v104
    %v106 = vsel %vm105, 0, %v104
    %v107 = vsub.s32 32, %v106
    %v108 = vshll.u32 %v99, %v106
    %v109 = vshrl.u32 %v91, %v107
    %v110 = vor.u32 %v108, %v109
    %v111 = vsub.s32 4294967266, %v106
    %v112 = vadd.s32 %v111, 127
    %v113 = vshll.u32 %v112, 23
    %v114 = vor.u32 4788187, %v113
    %v115 = vand.u32 2147483647, %v114
    %v117 = vcvt.s32.f32 %v110
    %v118 = vmul.f32 %v117, %v115
    %v119 = vxor.u32 %v118, 2147483648
    %v120 = vsel %vm37, %v119, %v118
    %v121 = vsub.s32 4, %v97
    %v122 = vsel %vm37, %v121, %v97
    %v123 = vsel %vm36, %v33, %v120
    %v124 = vsel %vm36, 0, %v122
    %v125 = vcosq.f32.pop %v123
    %v126 = vsinq.f32.pop %v123
    %vm127 = vweird.f32 %v33
    %v128 = vadd.s32 %v124, 3
    %v129 = vand.u32 %v128, 3
    %vm130 = vcmp.lt.s32.totalorder %v129, 2
    %vm131 = vcmp.eq.s32.totalorder %v129, 0
    %v132 = vxor.u32 %v126, 2147483648
    %v133 = vsel %vm131, %v125, %v132
    %vm134 = vcmp.eq.s32.totalorder %v129, 2
    %v135 = vxor.u32 %v125, 2147483648
    %v136 = vsel %vm134, %v135, %v126
    %v137 = vsel %vm130, %v133, %v136
    %v138 = vsel %vm127, nan, %v137
    %v139 = vand.u32 2147483647, %v34
    %vm140 = vcmp.le.f32.partialorder %v139, 0.7853982
    %vm141 = vcmp.lt.s32.totalorder %v34, 0
    %v142 = vand.u32 %v34, 2139095040
    %v143 = vshrl.u32 %v142, 23
    %v144 = vsub.s32 %v143, 127
    %v145 = vand.u32 2147483647, %v34
    %v146 = vand.u32 %v145, 8388607
    %v147 = vor.u32 %v146, 8388608
    %v148 = vsub.s32 0, %v147
    %v149 = vadd.s32 %v144, 1
    %vm150 = vcmp.gt.s32.totalorder %v149, 0
    %v151 = vsel %vm150, %v149, 0
    %v152 = vshrl.u32 %v151, 5
    %v153 = vand.u32 %v151, 31
    %v154 = vsub.s32 32, %v153
    %v155 = vshrl.u32 683565275, %v154
    %v156 = vshll.u32 683565275, %v153
    %v157 = vshrl.u32 2475754826, %v154
    %v158 = vor.u32 %v156, %v157
    %v159 = vshll.u32 2475754826, %v153
    %v160 = vshrl.u32 2131351028, %v154
    %v161 = vor.u32 %v159, %v160
    %v162 = vshll.u32 2131351028, %v153
    %v163 = vshrl.u32 2102212464, %v154
    %v164 = vor.u32 %v162, %v163
    %v165 = vshll.u32 2102212464, %v153
    %v166 = vshrl.u32 920167782, %v154
    %v167 = vor.u32 %v165, %v166
    %v168 = vshll.u32 920167782, %v153
    %v169 = vshrl.u32 1326507024, %v154
    %v170 = vor.u32 %v168, %v169
    %vm171 = vcmp.lt.s32.totalorder %v152, 1
    %vm172 = vcmp.lt.s32.totalorder %v152, 2
    %vm173 = vcmp.lt.s32.totalorder %v152, 3
    %vm174 = vcmp.lt.s32.totalorder %v152, 4
    %v175 = vsel %vm171, %v155, %v158
    %v176 = vsel %vm174, %v164, 2102212464
    %v177 = vsel %vm173, %v161, %v176
    %v178 = vsel %vm172, %v175, %v177
    %v179 = vsel %vm171, %v158, %v161
    %v180 = vsel %vm174, %v167, 920167782
    %v181 = vsel %vm173, %v164, %v180
    %v182 = vsel %vm172, %v179, %v181
    %v183 = vsel %vm171, %v161, %v164
    %v184 = vsel %vm174, %v170, 1326507024
    %v185 = vsel %vm173, %v167, %v184
    %v186 = vsel %vm172, %v183, %v185
    %v187 = vshll.u32 %v147, 8
    %v188 = vmul.u32.u64.compose %v187, %v186
    %v189 = vextract.low.u32 %v188
    %v190 = vextract.high.u32 %v188
    %v191 = vmul.u32.u64.compose %v187, %v182
    %v192 = vextract.low.u32 %v191
    %v193 = vextract.high.u32 %v191
    %v194 = vmul.u32 %v187, %v178
    %v195 = vadd.s32 %v190, %v192
    %vm196 = vc.u32 %v190, %v192
    %v197 = vadd.s32 %v193, 1
    %v198 = vsel %vm196, %v197, %v193
    %v199 = vadd.s32 %v194, %v198
    %v200 = vadd.s32 %v199, 536870912
    %v201 = vshrl.u32 %v200, 30
    %v202 = vshll.u32 %v201, 30
    %v203 = vsub.s32 %v199, %v202
    %vm204 = vcmp.lt.s32.totalorder %v203, 0
    %v205 = vsub.s32 0, %v203
    %v206 = vsel %vm204, %v205, %v203
    %v207 = vclz %v206
    %v208 = vsub.s32 %v207, 2
    %vm209 = vcmp.gt.s32.totalorder 0, %v208
    %v210 = vsel %vm209, 0, %v208
    %v211 = vsub.s32 32, %v210
    %v212 = vshll.u32 %v203, %v210
    %v213 = vshrl.u32 %v195, %v211
    %v214 = vor.u32 %v212, %v213
    %v215 = vsub.s32 4294967266, %v210
    %v216 = vadd.s32 %v215, 127
    %v217 = vshll.u32 %v216, 23
    %v218 = vor.u32 4788187, %v217
    %v219 = vand.u32 2147483647, %v218
    %v221 = vcvt.s32.f32 %v214
    %v222 = vmul.f32 %v221, %v219
    %v223 = vxor.u32 %v222, 2147483648
    %v224 = vsel %vm141, %v223, %v222
    %v225 = vsub.s32 4, %v201
    %v226 = vsel %vm141, %v225, %v201
    %v227 = vsel %vm140, %v34, %v224
    %v228 = vsel %vm140, 0, %v226
    %v229 = vcosq.f32.pop %v227
    %v230 = vsinq.f32.pop %v227
    %vm231 = vweird.f32 %v34
    %v232 = vadd.s32 %v228, 3
    %v233 = vand.u32 %v232, 3
    %vm234 = vcmp.lt.s32.totalorder %v233, 2
    %vm235 = vcmp.eq.s32.totalorder %v233, 0
    %v236 = vxor.u32 %v230, 2147483648
    %v237 = vsel %vm235, %v229, %v236
    %vm238 = vcmp.eq.s32.totalorder %v233, 2
    %v239 = vxor.u32 %v229, 2147483648
    %v240 = vsel %vm238, %v239, %v230
    %v241 = vsel %vm234, %v237, %v240
    %v242 = vsel %vm231, nan, %v241
    %v243 = vstv %s24
    %v244 = vmul.f32 %v243, %v138
    %v245 = vmul.f32 %v243, %v242
    %246 = vst [vmem:[%s2] sm:$0xff] %v244
    %247 = vst [vmem:[%s2 + $0x8] sm:$0xff] %v245
    // Predicated region
    $region14: #{sine_activation.1} parent=1 // pred_check
      _
    $region15: #{sine_activation.1} parent=1 // pred_check_branch
      %249 = sbr.rel (0) target = $region17
    $region16: #{sine_activation.1} parent=1 // pred_region
      _
    $region17: #{sine_activation.1} parent=1 // pred_fallthru
      _
    // Predicated region
    $region18: #{sine_activation.1} parent=1 // pred_check
      _
    $region19: #{sine_activation.1} parent=1 // pred_check_branch
      %251 = sbr.rel (0) target = $region21
    $region20: #{sine_activation.1} parent=1 // pred_region
      _
    $region21: #{sine_activation.1} parent=1 // pred_fallthru
      _
    %252 = vsyncpa [#allocation3], 1

</llo_original>
